<compile_context>
chip_gen: v5e
topology: v5e:2x2
jax: 0.10.0
libtpu: 0.0.40
codegen_flags: <defaults>
</compile_context>

<pallas_src>
import jax
import jax.numpy as jnp
from jax.experimental import pallas as pl
from jax.experimental.pallas import tpu as pltpu

_LANE = 128


def _hsigmoid_kernel(x_ref, o_ref):
    x = x_ref[...]
    # relu6(x + 3) / 6  ==  clamp(x + 3, 0, 6) * (1/6)
    y = jnp.clip(x + 3.0, 0.0, 6.0) * (1.0 / 6.0)
    o_ref[...] = y.astype(o_ref.dtype)


def hsigmoid(x, *, block_rows=4096, min_pallas_elements=0):
    """Hard sigmoid, elementwise. Accepts any shape (NCHW expected).

    block_rows=4096 -> 2 MiB f32 blocks (1 MiB bf16); raise toward 8192 on
    v5e/v6e if desired, keep <= ~8192 on v7x (64 MiB VMEM) without also
    raising vmem_limit_bytes.
    """
    orig_shape = x.shape
    dtype = x.dtype
    total = x.size
    if total == 0:
        return x

    # For tiny activations, the pallas_call launch + reshapes cost more than
    # the op itself; let XLA fuse it instead (caller-controlled threshold).
    if total < min_pallas_elements:
        return (jnp.clip(x + 3.0, 0.0, 6.0) / 6.0).astype(dtype)

    itemsize = jnp.dtype(dtype).itemsize
    # Minimum sublane multiple per dtype packing (f32:8, bf16:16, int8/fp8:32).
    sublane = {4: 8, 2: 16, 1: 32}.get(itemsize, 8)

    rows = pl.cdiv(total, _LANE)

    if rows <= block_rows:
        # Single block: just round rows up to the sublane multiple.
        tile_rows = max(sublane, pl.cdiv(rows, sublane) * sublane)
    else:
        tile_rows = max(sublane, (block_rows // sublane) * sublane)
    assert tile_rows % sublane == 0

    # Pad the row count up to a multiple of tile_rows (<= tile_rows-1 extra
    # rows) so the grid is exact and blocks stay large.
    pad_rows = pl.cdiv(rows, tile_rows) * tile_rows
    padded_total = pad_rows * _LANE

    x_flat = jnp.ravel(x)
    needs_pad = padded_total != total
    if needs_pad:
        x_flat = jnp.pad(x_flat, (0, padded_total - total))
    x2d = x_flat.reshape(pad_rows, _LANE)

    grid = (pad_rows // tile_rows,)

    cost = pl.CostEstimate(
        flops=4 * total,
        transcendentals=0,
        bytes_accessed=2 * padded_total * itemsize,
    )

    out2d = pl.pallas_call(
        _hsigmoid_kernel,
        out_shape=jax.ShapeDtypeStruct((pad_rows, _LANE), dtype),
        grid_spec=pltpu.PrefetchScalarGridSpec(
            num_scalar_prefetch=0,
            grid=grid,
            in_specs=[pl.BlockSpec((tile_rows, _LANE), lambda i: (i, 0))],
            out_specs=pl.BlockSpec((tile_rows, _LANE), lambda i: (i, 0)),
        ),
        compiler_params=pltpu.CompilerParams(
            dimension_semantics=("parallel",),
        ),
        cost_estimate=cost,
    )(x2d)

    if needs_pad:
        out_flat = out2d.reshape(-1)[:total]
    else:
        out_flat = out2d.reshape(-1)
    return out_flat.reshape(orig_shape)


def hsigmoid_ref(x):
    return jnp.clip(x + 3.0, 0.0, 6.0) / 6.0


if __name__ == "__main__":
    key = jax.random.PRNGKey(0)
    # NCHW, small shapes: batch=2, channels=4, spatial=16x16
    x = jax.random.normal(key, (2, 4, 16, 16), dtype=jnp.float32) * 4.0

    # min_pallas_elements=0 forces the Pallas path even for this small test
    # tensor (production callers would leave a ~1M-element threshold).
    y = hsigmoid(x, min_pallas_elements=0)
    y = jax.block_until_ready(y)

    y_ref = hsigmoid_ref(x)
    assert y.shape == x.shape and y.dtype == x.dtype
    assert jnp.allclose(y, y_ref, atol=1e-6, rtol=1e-6), "mismatch vs reference"
    print("KERNEL_OK")
</pallas_src>

<mosaic_0001>
module attributes {stable_mosaic.version = 11 : i64} {
  func.func @_hsigmoid_kernel(%arg0: i32, %arg1: memref<16x128xf32, #tpu.memory_space<vmem>>, %arg2: memref<16x128xf32, #tpu.memory_space<vmem>>) attributes {dimension_semantics = [#tpu.dimension_semantics<parallel>], iteration_bounds = array<i64: 1>, scalar_prefetch = 0 : i64, scratch_operands = 0 : i64, tpu.core_type = #tpu.core_type<tc>, window_params = [{transform_indices = @transform_0, window_bounds = array<i64: 16, 128>}, {transform_indices = @transform_1, window_bounds = array<i64: 16, 128>}]} {
    %c0 = arith.constant 0 : index
    %c0_0 = arith.constant 0 : index
    %0 = vector.load %arg1[%c0, %c0_0] : memref<16x128xf32, #tpu.memory_space<vmem>>, vector<16x128xf32>
    %cst = arith.constant 3.000000e+00 : f32
    %1 = vector.broadcast %cst : f32 to vector<16x128xf32>
    %2 = arith.addf %0, %1 : vector<16x128xf32>
    %cst_1 = arith.constant 0.000000e+00 : f32
    %cst_2 = arith.constant 6.000000e+00 : f32
    %3 = vector.broadcast %cst_1 : f32 to vector<16x128xf32>
    %4 = arith.maximumf %3, %2 : vector<16x128xf32>
    %5 = vector.broadcast %cst_2 : f32 to vector<16x128xf32>
    %6 = arith.minimumf %5, %4 : vector<16x128xf32>
    %cst_3 = arith.constant 0.166666672 : f32
    %7 = vector.broadcast %cst_3 : f32 to vector<16x128xf32>
    %8 = arith.mulf %6, %7 : vector<16x128xf32>
    %c0_4 = arith.constant 0 : index
    %c0_5 = arith.constant 0 : index
    %9 = vector.load %arg2[%c0_4, %c0_5] : memref<16x128xf32, #tpu.memory_space<vmem>>, vector<16x128xf32>
    tpu.vector_store %arg2[%c0_4, %c0_5], %8 {strides = array<i32>} : memref<16x128xf32, #tpu.memory_space<vmem>>, vector<16x128xf32>,
    return
  }
  func.func @transform_0(%arg0: i32) -> (i32, i32) {
    %c0_i32 = arith.constant 0 : i32
    %c0_i32_0 = arith.constant 0 : i32
    return %arg0, %c0_i32 : i32, i32
  }
  func.func @transform_1(%arg0: i32) -> (i32, i32) {
    %c0_i32 = arith.constant 0 : i32
    %c0_i32_0 = arith.constant 0 : i32
    return %arg0, %c0_i32 : i32, i32
  }
}

</mosaic_0001>

<llo_original>
// kernel: tpu_custom_call.1
$region0: #{tpu_custom_call.1}
  #allocation0 [shape = 'u32[]', space=smem, size = 0x4, offset = 0x4, fixed_abs, tag = 'smem constant byte address 0x4 - core index']
  #allocation1 [shape = 'u32[72,128]{1,0:T(1,128)}', space=vmem, size = 0x9000, scoped, tag = 'internal scratch']
  %s0 = inlined_call_operand.hbm [shape: f32[16,128], index: 0, kind: input, shape index: {}]
  %s1 = inlined_call_operand.hbm [shape: f32[16,128], index: 1, kind: output, shape index: {}]
  %s2 = sld [smem:[#allocation0]]
  $region18: #{tpu_custom_call.1} parent=0
    _
  %s4 = ssub.s32 1, %s2
  %s5 = scalar_select 0, %s4, %s2
  $region1: #{tpu_custom_call.1} parent=0
    #allocation2 [shape = 'u8[8192]{0}', space=vmem, size = 0x2000, scoped, tag = 'input window, operand 0, single buffered']
    #allocation3 [shape = 's32[1]{0}', space=sflag, size = 0x4, scoped, tag = 'scoped memory for tpu_custom_call.1']
    #allocation4 [shape = 's32[1]{0}', space=sflag, size = 0x4, scoped, tag = 'scoped memory for tpu_custom_call.1']
    #allocation5 [shape = 'u8[8192]{0}', space=vmem, size = 0x2000, scoped, tag = 'output window, operand 0, single buffered']
    %6 = vsyncpa [#allocation3], 0
    %7 = vsyncpa [#allocation4], 0
    // Predicated region
    $region2: #{tpu_custom_call.1} parent=1 // pred_check
      _
    $region3: #{tpu_custom_call.1} parent=1 // pred_check_branch
      %9 = sbr.rel (0) target = $region5
    $region4: #{tpu_custom_call.1} parent=1 // pred_region
      %11 = vsyncadd [#allocation3], 0
      %s12 = sshll.u32 %s0, 4
      %s13 = int_to_ptr.hbm [resolvable:$true] %s12
      %s14 = sshll.u32 [#allocation2], 4
      %s15 = int_to_ptr.vmem [resolvable:$true] %s14
      %20 = dma.hbm_to_vmem [thread:$0]  %s13, 256, %s15, [#allocation3], 128, 128, 8
    $region5: #{tpu_custom_call.1} parent=1 // pred_fallthru
      _
    // Predicated region
    $region6: #{tpu_custom_call.1} parent=1 // pred_check
      _
    $region7: #{tpu_custom_call.1} parent=1 // pred_check_branch
      %22 = sbr.rel (0) target = $region9
    $region8: #{tpu_custom_call.1} parent=1 // pred_region
      %24 = dma.done [#allocation3], 256
    $region9: #{tpu_custom_call.1} parent=1 // pred_fallthru
      _
    %v25 = vld [vmem:[#allocation2] sm:$0xff]
    %v26 = vld [vmem:[#allocation2 + $0x8] sm:$0xff]
    %v27 = vadd.f32 %v25, 3.0
    %v28 = vadd.f32 %v26, 3.0
    %v29 = vmax.f32 %v27, 0.0
    %v30 = vmax.f32 %v28, 0.0
    %v31 = vmin.f32 %v29, 6.0
    %v32 = vmin.f32 %v30, 6.0
    %v33 = vmul.f32 %v31, 0.16666667
    %v34 = vmul.f32 %v32, 0.16666667
    %35 = vst [vmem:[#allocation5] sm:$0xff] %v33
    %36 = vst [vmem:[#allocation5 + $0x8] sm:$0xff] %v34
    // Predicated region
    $region10: #{tpu_custom_call.1} parent=1 // pred_check
      _
    $region11: #{tpu_custom_call.1} parent=1 // pred_check_branch
      %38 = sbr.rel (0) target = $region13
    $region12: #{tpu_custom_call.1} parent=1 // pred_region
      %40 = vsyncadd [#allocation4], 0
      %s41 = sshll.u32 [#allocation5], 4
      %s42 = int_to_ptr.vmem [resolvable:$true] %s41
      %s43 = sshll.u32 %s1, 4
      %s44 = int_to_ptr.hbm [resolvable:$true] %s43
      %49 = dma.vmem_to_hbm [thread:$0]  %s42, 256, %s44, [#allocation4], 128, 128, 8
    $region13: #{tpu_custom_call.1} parent=1 // pred_fallthru
      _
    // Predicated region
    $region14: #{tpu_custom_call.1} parent=1 // pred_check
      _
    $region15: #{tpu_custom_call.1} parent=1 // pred_check_branch
      %51 = sbr.rel (0) target = $region17
    $region16: #{tpu_custom_call.1} parent=1 // pred_region
      %53 = dma.done [#allocation4], 256
    $region17: #{tpu_custom_call.1} parent=1 // pred_fallthru
      _
    %54 = vsyncpa [#allocation3], 1
    %55 = vsyncpa [#allocation4], 1

</llo_original>
